<compile_context>
chip_gen: v6e
topology: v6e:2x2x1
jax: 0.10.0
libtpu: 0.0.40
codegen_flags: <defaults>
</compile_context>

<pallas_src>
import jax
import jax.numpy as jnp
from jax.experimental import pallas as pl
from jax.experimental.pallas import tpu as pltpu


# Conservative, generation-safe tuning (see header):
_X_BLOCK_CAP_BYTES = 8 * 1024 * 1024     # per x/out block (v7x-safe)
_VMEM_BUDGET_BYTES = 40 * 1024 * 1024    # all revolving buffers combined
_VMEM_LIMIT_BYTES = 48 * 1024 * 1024     # scoped VMEM limit handed to Mosaic


def _make_bn_rows_kernel(apply_relu: bool):
    """Elementwise y = x*scale + shift (+ ReLU).

    Works for both layouts:
      NCHW path: x (rb, HW), scale/shift (rb, 1)  -> lane broadcast
      NHWC path: x (rb, C),  scale/shift (1, C)   -> sublane broadcast
    """

    def kernel(x_ref, scale_ref, shift_ref, o_ref):
        x = x_ref[...].astype(jnp.float32)
        y = x * scale_ref[...] + shift_ref[...]
        if apply_relu:
            y = jnp.maximum(y, 0.0)
        o_ref[...] = y.astype(o_ref.dtype)

    return kernel


def _pick_block_rows(rows: int, row_bytes: int, itemsize: int,
                     padded_param_bytes_per_row: int = 0,
                     fixed_overhead_bytes: int = 0) -> int:
    """Largest row-block that (a) keeps each x/out block <= 8 MiB, (b) keeps
    all revolving buffers (x + out double-buffered, plus the 128-lane-padded
    per-row params) inside the VMEM budget, (c) leaves grid >= 4 when rows
    allow, and (d) is a multiple of the dtype's sublane packing."""
    sub = max(8, 32 // max(1, itemsize))          # 8 f32, 16 bf16, 32 int8
    if rows <= sub:
        return rows
    # Per extra row of block, across all revolving buffers:
    #   x + out : 2 arrays x 2 buffers x row_bytes
    #   params  : padded_param_bytes_per_row (already includes its buffering)
    per_row = 4 * row_bytes + padded_param_bytes_per_row
    budget = max(per_row, _VMEM_BUDGET_BYTES - fixed_overhead_bytes)
    rb_budget = max(sub, budget // per_row)
    rb_cap = max(sub, _X_BLOCK_CAP_BYTES // max(1, row_bytes))
    rb = min(rows, rb_budget, rb_cap)
    if rows >= 4 * sub:
        # Keep at least 4 grid steps (2 per TensorCore on v7x; pipelining on
        # single-TC chips).
        rb = min(rb, -(-rows // 4))
    rb = max(sub, (rb // sub) * sub)
    return min(rb, rows)


def frozen_batch_norm_2d(x, weight, bias, running_mean, running_var,
                         *, apply_relu: bool = False, eps: float = 1e-05):
    """NCHW path. x: (N, C, H, W); params: (C,).
    apply_relu=False matches FrozenBatchNorm2d.forward exactly;
    apply_relu=True matches the tower's FrozenBN -> ReLU pair."""
    N, C, H, W = x.shape
    rows, hw = N * C, H * W

    # Hoisted per-channel precompute ((C,)-sized, done once in f32).
    scale = weight.astype(jnp.float32) * jax.lax.rsqrt(
        running_var.astype(jnp.float32) + eps)
    shift = bias.astype(jnp.float32) - running_mean.astype(jnp.float32) * scale

    # Per-row (n, c) columns; negligible HBM traffic, lane-broadcast in kernel.
    scale_rows = jnp.broadcast_to(scale[None, :], (N, C)).reshape(rows, 1)
    shift_rows = jnp.broadcast_to(shift[None, :], (N, C)).reshape(rows, 1)

    # Metadata-only reshape: NCHW contiguous -> (N*C, H*W). Last dim = lanes.
    x2 = x.reshape(rows, hw)

    # (rb, 1) f32 blocks pad to (rb, 128) in VMEM: 512 B/row per buffer,
    # 2 arrays x 2 revolving buffers = 2048 B/row of block.
    rb = _pick_block_rows(rows, hw * x.dtype.itemsize, x.dtype.itemsize,
                          padded_param_bytes_per_row=4 * 128 * 4)
    grid = (pl.cdiv(rows, rb),)

    out2 = pl.pallas_call(
        _make_bn_rows_kernel(apply_relu),
        out_shape=jax.ShapeDtypeStruct((rows, hw), x.dtype),
        grid_spec=pltpu.PrefetchScalarGridSpec(
            num_scalar_prefetch=0,
            grid=grid,
            in_specs=[
                pl.BlockSpec((rb, hw), lambda r: (r, 0)),  # x
                pl.BlockSpec((rb, 1), lambda r: (r, 0)),   # per-row scale
                pl.BlockSpec((rb, 1), lambda r: (r, 0)),   # per-row shift
            ],
            out_specs=pl.BlockSpec((rb, hw), lambda r: (r, 0)),
        ),
        compiler_params=pltpu.CompilerParams(
            dimension_semantics=("parallel",),
            vmem_limit_bytes=_VMEM_LIMIT_BYTES,
        ),
    )(x2, scale_rows, shift_rows)

    return out2.reshape(N, C, H, W)


def frozen_batch_norm_2d_nhwc(x, weight, bias, running_mean, running_var,
                              *, apply_relu: bool = False, eps: float = 1e-05):
    """NHWC path for wide tower layers (C a multiple of 128).
    x: (N, H, W, C); params: (C,). Channels map to lanes; scale/shift are a
    single (1, C) row each, effectively resident in VMEM."""
    N, H, W, C = x.shape
    rows = N * H * W

    scale = weight.astype(jnp.float32) * jax.lax.rsqrt(
        running_var.astype(jnp.float32) + eps)
    shift = bias.astype(jnp.float32) - running_mean.astype(jnp.float32) * scale
    scale_row = scale.reshape(1, C)
    shift_row = shift.reshape(1, C)

    x2 = x.reshape(rows, C)  # metadata-only reshape

    rb = _pick_block_rows(rows, C * x.dtype.itemsize, x.dtype.itemsize,
                          padded_param_bytes_per_row=0,
                          fixed_overhead_bytes=4 * C * 4)  # (1,C) f32 x 2 x 2
    grid = (pl.cdiv(rows, rb),)

    out2 = pl.pallas_call(
        _make_bn_rows_kernel(apply_relu),
        out_shape=jax.ShapeDtypeStruct((rows, C), x.dtype),
        grid_spec=pltpu.PrefetchScalarGridSpec(
            num_scalar_prefetch=0,
            grid=grid,
            in_specs=[
                pl.BlockSpec((rb, C), lambda r: (r, 0)),  # x
                pl.BlockSpec((1, C), lambda r: (0, 0)),   # scale (resident)
                pl.BlockSpec((1, C), lambda r: (0, 0)),   # shift (resident)
            ],
            out_specs=pl.BlockSpec((rb, C), lambda r: (r, 0)),
        ),
        compiler_params=pltpu.CompilerParams(
            dimension_semantics=("parallel",),
            vmem_limit_bytes=_VMEM_LIMIT_BYTES,
        ),
    )(x2, scale_row, shift_row)

    return out2.reshape(N, H, W, C)


def _ref_bn(x, weight, bias, running_mean, running_var, channel_axis, relu):
    """Plain-JAX reference mirroring the PyTorch FrozenBatchNorm2d.forward."""
    eps = 1e-05
    shape = [1] * x.ndim
    shape[channel_axis] = -1
    w_ = weight.reshape(shape)
    b_ = bias.reshape(shape)
    rv_ = running_var.reshape(shape)
    rm_ = running_mean.reshape(shape)
    scale = w_ * jax.lax.rsqrt(rv_ + eps)
    shift = b_ - rm_ * scale
    y = x * scale + shift
    return jnp.maximum(y, 0.0) if relu else y


if __name__ == "__main__":
    key = jax.random.PRNGKey(0)
    kx1, kx2, kw, kb, km, kv = jax.random.split(key, 6)

    # ---- NCHW path (narrow head layers), shapes from the module's head ----
    N, C, H, W = 2, 4, 16, 16
    x = jax.random.normal(kx1, (N, C, H, W), dtype=jnp.float32)
    weight = jnp.ones((C,), jnp.float32) + 0.1 * jax.random.normal(kw, (C,))
    bias = 0.1 * jax.random.normal(kb, (C,))
    running_mean = 0.1 * jax.random.normal(km, (C,))
    running_var = jnp.ones((C,), jnp.float32) + 0.05 * jnp.abs(
        jax.random.normal(kv, (C,)))

    out = jax.block_until_ready(
        frozen_batch_norm_2d(x, weight, bias, running_mean, running_var))
    ref = _ref_bn(x, weight, bias, running_mean, running_var, 1, relu=False)
    assert out.shape == ref.shape and out.dtype == ref.dtype
    assert jnp.allclose(out, ref, atol=1e-5, rtol=1e-5)

    out_r = jax.block_until_ready(
        frozen_batch_norm_2d(x, weight, bias, running_mean, running_var,
                             apply_relu=True))
    ref_r = _ref_bn(x, weight, bias, running_mean, running_var, 1, relu=True)
    assert jnp.allclose(out_r, ref_r, atol=1e-5, rtol=1e-5)

    # ---- NHWC path (wide tower layers, C multiple of 128) ----
    C2, H2, W2 = 128, 8, 8
    kx3, kw2, kb2, km2, kv2 = jax.random.split(kx2, 5)
    x_nhwc = jax.random.normal(kx3, (N, H2, W2, C2), dtype=jnp.float32)
    w2 = jnp.ones((C2,), jnp.float32) + 0.1 * jax.random.normal(kw2, (C2,))
    b2 = 0.1 * jax.random.normal(kb2, (C2,))
    rm2 = 0.1 * jax.random.normal(km2, (C2,))
    rv2 = jnp.ones((C2,), jnp.float32) + 0.05 * jnp.abs(
        jax.random.normal(kv2, (C2,)))

    out2 = jax.block_until_ready(
        frozen_batch_norm_2d_nhwc(x_nhwc, w2, b2, rm2, rv2, apply_relu=True))
    ref2 = _ref_bn(x_nhwc, w2, b2, rm2, rv2, 3, relu=True)
    assert out2.shape == ref2.shape and out2.dtype == ref2.dtype
    assert jnp.allclose(out2, ref2, atol=1e-5, rtol=1e-5)

    print("KERNEL_OK")
</pallas_src>

<mosaic_0001>
module attributes {stable_mosaic.version = 11 : i64} {
  func.func @kernel(%arg0: i32, %arg1: memref<8x256xf32, #tpu.memory_space<vmem>>, %arg2: memref<8x1xf32, #tpu.memory_space<vmem>>, %arg3: memref<8x1xf32, #tpu.memory_space<vmem>>, %arg4: memref<8x256xf32, #tpu.memory_space<vmem>>) attributes {dimension_semantics = [#tpu.dimension_semantics<parallel>], iteration_bounds = array<i64: 1>, scalar_prefetch = 0 : i64, scratch_operands = 0 : i64, tpu.core_type = #tpu.core_type<tc>, window_params = [{transform_indices = @transform_0, window_bounds = array<i64: 8, 256>}, {transform_indices = @transform_1, window_bounds = array<i64: 8, 1>}, {transform_indices = @transform_2, window_bounds = array<i64: 8, 1>}, {transform_indices = @transform_3, window_bounds = array<i64: 8, 256>}]} {
    %c0 = arith.constant 0 : index
    %c0_0 = arith.constant 0 : index
    %0 = vector.load %arg1[%c0, %c0_0] : memref<8x256xf32, #tpu.memory_space<vmem>>, vector<8x256xf32>
    %c0_1 = arith.constant 0 : index
    %c0_2 = arith.constant 0 : index
    %1 = vector.load %arg2[%c0_1, %c0_2] : memref<8x1xf32, #tpu.memory_space<vmem>>, vector<8x1xf32>
    %2 = vector.broadcast %1 : vector<8x1xf32> to vector<8x256xf32>
    %3 = arith.mulf %0, %2 : vector<8x256xf32>
    %c0_3 = arith.constant 0 : index
    %c0_4 = arith.constant 0 : index
    %4 = vector.load %arg3[%c0_3, %c0_4] : memref<8x1xf32, #tpu.memory_space<vmem>>, vector<8x1xf32>
    %5 = vector.broadcast %4 : vector<8x1xf32> to vector<8x256xf32>
    %6 = arith.addf %3, %5 : vector<8x256xf32>
    %c0_5 = arith.constant 0 : index
    %c0_6 = arith.constant 0 : index
    %7 = vector.load %arg4[%c0_5, %c0_6] : memref<8x256xf32, #tpu.memory_space<vmem>>, vector<8x256xf32>
    tpu.vector_store %arg4[%c0_5, %c0_6], %6 {strides = array<i32>} : memref<8x256xf32, #tpu.memory_space<vmem>>, vector<8x256xf32>,
    return
  }
  func.func @transform_0(%arg0: i32) -> (i32, i32) {
    %c0_i32 = arith.constant 0 : i32
    %c0_i32_0 = arith.constant 0 : i32
    return %arg0, %c0_i32 : i32, i32
  }
  func.func @transform_1(%arg0: i32) -> (i32, i32) {
    %c0_i32 = arith.constant 0 : i32
    %c0_i32_0 = arith.constant 0 : i32
    return %arg0, %c0_i32 : i32, i32
  }
  func.func @transform_2(%arg0: i32) -> (i32, i32) {
    %c0_i32 = arith.constant 0 : i32
    %c0_i32_0 = arith.constant 0 : i32
    return %arg0, %c0_i32 : i32, i32
  }
  func.func @transform_3(%arg0: i32) -> (i32, i32) {
    %c0_i32 = arith.constant 0 : i32
    %c0_i32_0 = arith.constant 0 : i32
    return %arg0, %c0_i32 : i32, i32
  }
}

</mosaic_0001>

<llo_original>
// kernel: tpu_custom_call.1
$region0: #{tpu_custom_call.1}
  #allocation0 [shape = 'u32[]', space=smem, size = 0x4, offset = 0x4, fixed_abs, tag = 'smem constant byte address 0x4 - core index']
  #allocation1 [shape = 'u32[144,128]{1,0:T(1,128)}', space=vmem, size = 0x12000, scoped, tag = 'internal scratch']
  %s0 = inlined_call_operand.vmem [shape: f32[8,256], index: 0, kind: input, shape index: {}]
  %s1 = inlined_call_operand.vmem [shape: f32[8,1], index: 1, kind: input, shape index: {}]
  %s2 = inlined_call_operand.vmem [shape: f32[8,1], index: 2, kind: input, shape index: {}]
  %s3 = inlined_call_operand.hbm [shape: f32[8,256], index: 3, kind: output, shape index: {}]
  %s4 = sld [smem:[#allocation0]]
  $region22: #{tpu_custom_call.1} parent=0
    _
  %s6 = ssub.s32 1, %s4
  %s7 = scalar_select 0, %s6, %s4
  $region1: #{tpu_custom_call.1} parent=0
    #allocation2 [shape = 'u8[8192]{0}', space=vmem, size = 0x2000, scoped, tag = 'output window, operand 0, single buffered']
    #allocation3 [shape = 's32[1]{0}', space=sflag, size = 0x4, scoped, tag = 'scoped memory for tpu_custom_call.1']
    %8 = vsyncpa [#allocation3], 0
    // Predicated region
    $region2: #{tpu_custom_call.1} parent=1 // pred_check
      _
    $region3: #{tpu_custom_call.1} parent=1 // pred_check_branch
      %10 = sbr.rel (0) target = $region5
    $region4: #{tpu_custom_call.1} parent=1 // pred_region
      _
    $region5: #{tpu_custom_call.1} parent=1 // pred_fallthru
      _
    // Predicated region
    $region6: #{tpu_custom_call.1} parent=1 // pred_check
      _
    $region7: #{tpu_custom_call.1} parent=1 // pred_check_branch
      %12 = sbr.rel (0) target = $region9
    $region8: #{tpu_custom_call.1} parent=1 // pred_region
      _
    $region9: #{tpu_custom_call.1} parent=1 // pred_fallthru
      _
    // Predicated region
    $region10: #{tpu_custom_call.1} parent=1 // pred_check
      _
    $region11: #{tpu_custom_call.1} parent=1 // pred_check_branch
      %14 = sbr.rel (0) target = $region13
    $region12: #{tpu_custom_call.1} parent=1 // pred_region
      _
    $region13: #{tpu_custom_call.1} parent=1 // pred_fallthru
      _
    %v15 = vld [vmem:[%s0] sm:$0xff]
    %v16 = vld [vmem:[%s0 + $0x8] sm:$0xff]
    %v17 = vld [vmem:[%s1] sm:$0xff]
    %19 = vset.pattern.permute.xlu0 0
    %20 = vperm.xlu0 %19, %v17
    %v21 = vpop.permute.xlu0 %20
    %v23 = vmul.f32 %v15, %v21
    %v24 = vmul.f32 %v16, %v21
    %v25 = vld [vmem:[%s2] sm:$0xff]
    %27 = vset.pattern.permute.xlu0 0
    %28 = vperm.xlu0 %27, %v25
    %v29 = vpop.permute.xlu0 %28
    %v31 = vadd.f32 %v23, %v29
    %v32 = vadd.f32 %v24, %v29
    %33 = vst [vmem:[#allocation2] sm:$0xff] %v31
    %34 = vst [vmem:[#allocation2 + $0x8] sm:$0xff] %v32
    // Predicated region
    $region14: #{tpu_custom_call.1} parent=1 // pred_check
      _
    $region15: #{tpu_custom_call.1} parent=1 // pred_check_branch
      %36 = sbr.rel (0) target = $region17
    $region16: #{tpu_custom_call.1} parent=1 // pred_region
      %s38 = ssub.s32 256, 256
      %39 = vsyncadd [#allocation3], %s38
      %s41 = sshll.u32 [#allocation2], 4
      %s42 = int_to_ptr.vmem [resolvable:$true] %s41
      %44 = dma.vmem_to_hbm [thread:$0]  %s42, 256, %s3, [#allocation3]
    $region17: #{tpu_custom_call.1} parent=1 // pred_fallthru
      _
    // Predicated region
    $region18: #{tpu_custom_call.1} parent=1 // pred_check
      _
    $region19: #{tpu_custom_call.1} parent=1 // pred_check_branch
      %46 = sbr.rel (0) target = $region21
    $region20: #{tpu_custom_call.1} parent=1 // pred_region
      %47 = dma.done [#allocation3], 256
    $region21: #{tpu_custom_call.1} parent=1 // pred_fallthru
      _
    %48 = vsyncpa [#allocation3], 1

</llo_original>
